<compile_context>
chip_gen: v7x
topology: tpu7x:2x2x1
jax: 0.10.0
libtpu: 0.0.40
codegen_flags: <defaults>
</compile_context>

<pallas_src>
import functools

import jax
import jax.numpy as jnp
from jax.experimental import pallas as pl
from jax.experimental.pallas import tpu as pltpu

_LANE = 128
_SUBLANE = 8
_VMEM_CAP = 48 * 1024 * 1024            # headroom under v7x's 64 MiB VMEM
_RESIDENT_VMEM_BUDGET = 40 * 1024 * 1024  # use resident path if buffers fit here
_MIN_PALLAS_FLOPS = 1 << 22              # below this, plain XLA fusion wins


def _round_up(x, m):
    return ((x + m - 1) // m) * m


def _largest_divisor_tile(extent, tile, step=_LANE):
    """Largest t <= tile (multiple of `step`) that divides `extent`."""
    t = min(tile, extent)
    t = max((t // step) * step, step)
    while extent % t:
        t -= step
    return t


# ---------------------------------------------------------------------------
# Kernels
# ---------------------------------------------------------------------------
def _resident_kernel(x_ref, w_ref, b_ref, ui_ref, za_ref):
    # Whole-K matmul.  The weight block's index_map is constant along the
    # inner (M) grid axis, so Pallas skips its re-DMA and it stays resident.
    y = jnp.dot(x_ref[...], w_ref[...], preferred_element_type=jnp.float32)
    y = y + b_ref[...]
    za_ref[...] = y.astype(za_ref.dtype)
    # TODO(synk): emit ui in bf16 (or drop it and relu za downstream) to cut
    # output write traffic — biggest win on v5e's single vst slot.
    ui_ref[...] = jnp.maximum(y, 0.0).astype(ui_ref.dtype)


def _ktiled_kernel(x_ref, w_ref, b_ref, ui_ref, za_ref, acc_ref):
    k = pl.program_id(2)

    @pl.when(k == 0)
    def _init():
        acc_ref[...] = jnp.zeros_like(acc_ref)

    acc_ref[...] += jnp.dot(
        x_ref[...], w_ref[...], preferred_element_type=jnp.float32
    )

    @pl.when(k == pl.num_programs(2) - 1)
    def _finalize():
        y = acc_ref[...] + b_ref[...]
        za_ref[...] = y.astype(za_ref.dtype)
        ui_ref[...] = jnp.maximum(y, 0.0).astype(ui_ref.dtype)


# ---------------------------------------------------------------------------
# Wrappers
# ---------------------------------------------------------------------------
def prepare_vector_map_params(weight, bias):
    """One-time glue: transpose + lane-pad nn.Linear params.

    weight: [D_out, D_in] (PyTorch layout), bias: [D_out].
    Returns (w_p [Kp, Np], b_p [1, Np]) with Kp, Np rounded up to 128.
    Hoisted out of the per-step forward so the transpose/pad HBM traffic is
    paid once (at "module init"), not on every call.
    """
    d_out, d_in = weight.shape
    Kp = _round_up(d_in, _LANE)
    Np = _round_up(d_out, _LANE)
    w_p = jnp.zeros((Kp, Np), weight.dtype).at[:d_in, :d_out].set(weight.T)
    b_p = jnp.zeros((1, Np), bias.dtype).at[0, :d_out].set(bias)
    return w_p, b_p


@functools.partial(
    jax.jit,
    static_argnames=("d_in", "d_out", "tm", "tn", "tk",
                     "force_pallas", "force_k_tiling"),
)
def vector_map_forward_padded(x, w_p, b_p, *, d_in, d_out,
                              tm=256, tn=256, tk=512,
                              force_pallas=False, force_k_tiling=False):
    """Forward with pre-padded params.  Returns (ui, za), each [B, d_out]."""
    B = x.shape[0]
    Kp, Np = w_p.shape
    assert x.shape[1] == d_in and d_in <= Kp and d_out <= Np

    flops = 2 * B * d_in * d_out
    if not force_pallas and flops < _MIN_PALLAS_FLOPS:
        # Tiny problem: pallas_call launch + padding glue dominate the real
        # work — let XLA fuse a plain dot + relu instead.
        y = x @ w_p[:d_in, :d_out] + b_p[0, :d_out]
        return jnp.maximum(y, 0.0), y

    # ---- tiling (all static Python) ---------------------------------------
    Mp8 = _round_up(B, _SUBLANE)
    tm = min(tm, Mp8)
    Mp = _round_up(Mp8, tm)
    tn = _largest_divisor_tile(Np, tn)

    # Guarantee >= 2 independent tiles so both v7x TensorCores get work.
    if (Mp // tm) * (Np // tn) < 2 and Np // _LANE >= 2:
        for cand in range(tn - _LANE, _LANE - 1, -_LANE):
            if Np % cand == 0:
                tn = cand
                break

    # Activation pad: skipped entirely when already aligned (common case),
    # avoiding an extra HBM round trip of x.
    if (Mp, Kp) == (B, d_in):
        x_p = x
    else:
        x_p = jnp.zeros((Mp, Kp), x.dtype).at[:B, :d_in].set(x)

    itemsize = 4  # f32 tiles / accumulator dominate the VMEM budget
    out_sd = jax.ShapeDtypeStruct((Mp, Np), x.dtype)
    cost = pl.CostEstimate(
        flops=2 * Mp * Np * Kp,
        bytes_accessed=itemsize * (Mp * Kp + Kp * Np + 2 * Mp * Np),
        transcendentals=0,
    )

    # Double-buffered x block + weight block + 2 output blocks + bias block.
    resident_bytes = 2 * (tm * Kp + Kp * tn + 2 * tm * tn + tn) * itemsize
    use_resident = (not force_k_tiling) and resident_bytes <= _RESIDENT_VMEM_BUDGET

    if use_resident:
        vmem_limit = min(max(resident_bytes + (2 << 20), 16 << 20), _VMEM_CAP)
        # Grid: N outer, M inner -> weight block index constant along the
        # inner axis => W DMA'd from HBM once per N tile, VMEM-resident.
        ui_p, za_p = pl.pallas_call(
            _resident_kernel,
            out_shape=(out_sd, out_sd),
            grid=(Np // tn, Mp // tm),
            in_specs=[
                pl.BlockSpec((tm, Kp), lambda j, i: (i, 0)),
                pl.BlockSpec((Kp, tn), lambda j, i: (0, j)),
                pl.BlockSpec((1, tn), lambda j, i: (0, j)),
            ],
            out_specs=[
                pl.BlockSpec((tm, tn), lambda j, i: (i, j)),
                pl.BlockSpec((tm, tn), lambda j, i: (i, j)),
            ],
            compiler_params=pltpu.CompilerParams(
                dimension_semantics=("parallel", "parallel"),
                vmem_limit_bytes=vmem_limit,
            ),
            cost_estimate=cost,
        )(x_p, w_p, b_p)
    else:
        tk = _largest_divisor_tile(Kp, tk)
        ktiled_bytes = (2 * (tm * tk + tk * tn + 2 * tm * tn + tn) * itemsize
                        + tm * tn * itemsize)
        vmem_limit = min(max(ktiled_bytes + (2 << 20), 16 << 20), _VMEM_CAP)
        ui_p, za_p = pl.pallas_call(
            _ktiled_kernel,
            out_shape=(out_sd, out_sd),
            grid=(Mp // tm, Np // tn, Kp // tk),
            in_specs=[
                pl.BlockSpec((tm, tk), lambda i, j, k: (i, k)),
                pl.BlockSpec((tk, tn), lambda i, j, k: (k, j)),
                pl.BlockSpec((1, tn), lambda i, j, k: (0, j)),
            ],
            out_specs=[
                pl.BlockSpec((tm, tn), lambda i, j, k: (i, j)),
                pl.BlockSpec((tm, tn), lambda i, j, k: (i, j)),
            ],
            scratch_shapes=[pltpu.VMEM((tm, tn), jnp.float32)],
            compiler_params=pltpu.CompilerParams(
                dimension_semantics=("parallel", "parallel", "arbitrary"),
                vmem_limit_bytes=vmem_limit,
            ),
            cost_estimate=cost,
        )(x_p, w_p, b_p)

    return ui_p[:B, :d_out], za_p[:B, :d_out]


def vector_map_forward(x, weight, bias, **kwargs):
    """Convenience one-shot API (pads params on the fly).

    For repeated calls with fixed weights, call prepare_vector_map_params()
    once and reuse the padded params with vector_map_forward_padded().
    """
    w_p, b_p = prepare_vector_map_params(weight, bias)
    return vector_map_forward_padded(
        x, w_p, b_p, d_in=weight.shape[1], d_out=weight.shape[0], **kwargs
    )


# ---------------------------------------------------------------------------
# Self test
# ---------------------------------------------------------------------------
if __name__ == "__main__":
    def make_case(key, batch, d_in, d_out):
        kx, kw, kb = jax.random.split(key, 3)
        bound = 1.0 / (d_in ** 0.5)
        weight = jax.random.uniform(kw, (d_out, d_in), jnp.float32, -bound, bound)
        bias = jax.random.uniform(kb, (d_out,), jnp.float32, -bound, bound)
        x = jax.random.normal(kx, (batch, d_in), jnp.float32)
        return x, weight, bias

    def check(x, weight, bias, ui, za, tol=2e-2):
        za_ref = x @ weight.T + bias[None, :]
        ui_ref = jnp.maximum(za_ref, 0.0)
        assert za.shape == za_ref.shape and ui.shape == ui_ref.shape
        assert jnp.allclose(za, za_ref, atol=tol, rtol=tol), float(
            jnp.max(jnp.abs(za - za_ref)))
        assert jnp.allclose(ui, ui_ref, atol=tol, rtol=tol)
        # ui must be exactly relu of the za the kernel produced.
        assert jnp.array_equal(ui, jnp.maximum(za, 0.0))

    keys = jax.random.split(jax.random.PRNGKey(0), 3)

    # 1) The module's natural tiny shape, forced through the Pallas
    #    weight-resident path (params padded once, reused).
    x, w, b = make_case(keys[0], 8, 32, 32)
    w_p, b_p = prepare_vector_map_params(w, b)
    ui, za = vector_map_forward_padded(x, w_p, b_p, d_in=32, d_out=32,
                                       force_pallas=True)
    jax.block_until_ready((ui, za))
    check(x, w, b, ui, za)

    # 2) Medium shape, default dispatch (weight-resident Pallas path,
    #    unaligned D_out to exercise N padding / un-slicing).
    x, w, b = make_case(keys[1], 256, 512, 384)
    ui, za = vector_map_forward(x, w, b)
    jax.block_until_ready((ui, za))
    check(x, w, b, ui, za)

    # 3) K-tiled reduction path (exercises the accumulator init/finalize and
    #    the v7x N-split logic).
    x, w, b = make_case(keys[2], 128, 1024, 256)
    ui, za = vector_map_forward(x, w, b, force_k_tiling=True)
    jax.block_until_ready((ui, za))
    check(x, w, b, ui, za)

    print("KERNEL_OK")
</pallas_src>

<mosaic_0001>
module attributes {stable_mosaic.version = 11 : i64} {
  func.func @_resident_kernel(%arg0: i32, %arg1: i32, %arg2: memref<8x128xf32, #tpu.memory_space<vmem>>, %arg3: memref<128x128xf32, #tpu.memory_space<vmem>>, %arg4: memref<1x128xf32, #tpu.memory_space<vmem>>, %arg5: memref<8x128xf32, #tpu.memory_space<vmem>>, %arg6: memref<8x128xf32, #tpu.memory_space<vmem>>) attributes {dimension_semantics = [#tpu.dimension_semantics<parallel>, #tpu.dimension_semantics<parallel>], iteration_bounds = array<i64: 1, 1>, scalar_prefetch = 0 : i64, scratch_operands = 0 : i64, tpu.core_type = #tpu.core_type<tc>, window_params = [{transform_indices = @transform_0, window_bounds = array<i64: 8, 128>}, {transform_indices = @transform_1, window_bounds = array<i64: 128, 128>}, {transform_indices = @transform_2, window_bounds = array<i64: 1, 128>}, {transform_indices = @transform_3, window_bounds = array<i64: 8, 128>}, {transform_indices = @transform_4, window_bounds = array<i64: 8, 128>}]} {
    %c0 = arith.constant 0 : index
    %c0_0 = arith.constant 0 : index
    %0 = vector.load %arg2[%c0, %c0_0] : memref<8x128xf32, #tpu.memory_space<vmem>>, vector<8x128xf32>
    %c0_1 = arith.constant 0 : index
    %c0_2 = arith.constant 0 : index
    %1 = vector.load %arg3[%c0_1, %c0_2] : memref<128x128xf32, #tpu.memory_space<vmem>>, vector<128x128xf32>
    %cst = arith.constant dense<0.000000e+00> : vector<8x128xf32>
    %2 = tpu.matmul %0, %1, %cst {dimension_numbers = #tpu.dot_dimension_numbers<[1], [0], [0], [1], [0, 0, 1, 1], [], []>} : vector<8x128xf32>, vector<128x128xf32>, vector<8x128xf32> -> vector<8x128xf32>
    %c0_3 = arith.constant 0 : index
    %c0_4 = arith.constant 0 : index
    %3 = vector.load %arg4[%c0_3, %c0_4] : memref<1x128xf32, #tpu.memory_space<vmem>>, vector<1x128xf32>
    %4 = vector.broadcast %3 : vector<1x128xf32> to vector<8x128xf32>
    %5 = arith.addf %2, %4 : vector<8x128xf32>
    %c0_5 = arith.constant 0 : index
    %c0_6 = arith.constant 0 : index
    %6 = vector.load %arg6[%c0_5, %c0_6] : memref<8x128xf32, #tpu.memory_space<vmem>>, vector<8x128xf32>
    tpu.vector_store %arg6[%c0_5, %c0_6], %5 {strides = array<i32>} : memref<8x128xf32, #tpu.memory_space<vmem>>, vector<8x128xf32>,
    %cst_7 = arith.constant 0.000000e+00 : f32
    %7 = vector.broadcast %cst_7 : f32 to vector<8x128xf32>
    %8 = arith.maximumf %5, %7 : vector<8x128xf32>
    %c0_8 = arith.constant 0 : index
    %c0_9 = arith.constant 0 : index
    %9 = vector.load %arg5[%c0_8, %c0_9] : memref<8x128xf32, #tpu.memory_space<vmem>>, vector<8x128xf32>
    tpu.vector_store %arg5[%c0_8, %c0_9], %8 {strides = array<i32>} : memref<8x128xf32, #tpu.memory_space<vmem>>, vector<8x128xf32>,
    return
  }
  func.func @transform_0(%arg0: i32, %arg1: i32) -> (i32, i32) {
    %c0_i32 = arith.constant 0 : i32
    %c0_i32_0 = arith.constant 0 : i32
    return %arg1, %c0_i32 : i32, i32
  }
  func.func @transform_1(%arg0: i32, %arg1: i32) -> (i32, i32) {
    %c0_i32 = arith.constant 0 : i32
    %c0_i32_0 = arith.constant 0 : i32
    return %c0_i32, %arg0 : i32, i32
  }
  func.func @transform_2(%arg0: i32, %arg1: i32) -> (i32, i32) {
    %c0_i32 = arith.constant 0 : i32
    %c0_i32_0 = arith.constant 0 : i32
    return %c0_i32, %arg0 : i32, i32
  }
  func.func @transform_3(%arg0: i32, %arg1: i32) -> (i32, i32) {
    %c0_i32 = arith.constant 0 : i32
    return %arg1, %arg0 : i32, i32
  }
  func.func @transform_4(%arg0: i32, %arg1: i32) -> (i32, i32) {
    %c0_i32 = arith.constant 0 : i32
    return %arg1, %arg0 : i32, i32
  }
}

</mosaic_0001>

<llo_original>
// kernel: vector_map_forward_padded.1
$region0: #{vector_map_forward_padded.1}
  #allocation0 [shape = 'u32[]', space=smem, size = 0x4, offset = 0x4, fixed_abs, tag = 'smem constant byte address 0x4 - core index']
  #allocation1 [shape = 'u32[144,128]{1,0:T(1,128)}', space=vmem, size = 0x12000, scoped, tag = 'internal scratch']
  %s0 = inlined_call_operand.vmem [shape: f32[8,128], index: 0, kind: input, shape index: {}]
  %s1 = inlined_call_operand.hbm [shape: f32[128,128], index: 1, kind: input, shape index: {}]
  %s2 = inlined_call_operand.vmem [shape: f32[1,128], index: 2, kind: input, shape index: {}]
  %s3 = inlined_call_operand.hbm [shape: f32[8,128], index: 3, kind: output, shape index: {0}]
  %s4 = inlined_call_operand.hbm [shape: f32[8,128], index: 4, kind: output, shape index: {1}]
  %5 = xla_tuple %s3, %s4
  %s6 = sld [smem:[#allocation0]]
  $region34: #{vector_map_forward_padded.1} parent=0
    _
  %s8 = ssub.s32 1, %s6
  %s9 = scalar_select 0, %s8, %s6
  $region1: #{vector_map_forward_padded.1} parent=0
    #allocation2 [shape = 'u8[65536]{0}', space=vmem, size = 0x10000, scoped, tag = 'input window, operand 1, single buffered']
    #allocation3 [shape = 's32[1]{0}', space=sflag, size = 0x4, scoped, tag = 'scoped memory for vector_map_forward_padded.1']
    #allocation4 [shape = 's32[1]{0}', space=sflag, size = 0x4, scoped, tag = 'scoped memory for vector_map_forward_padded.1']
    #allocation5 [shape = 'u8[4096]{0}', space=vmem, size = 0x1000, scoped, tag = 'output window, operand 0, single buffered']
    #allocation6 [shape = 'u8[4096]{0}', space=vmem, size = 0x1000, scoped, tag = 'output window, operand 1, single buffered']
    #allocation7 [shape = 's32[1]{0}', space=sflag, size = 0x4, scoped, tag = 'scoped memory for vector_map_forward_padded.1']
    %10 = vsyncpa [#allocation3], 0
    %11 = vsyncpa [#allocation4], 0
    %12 = vsyncpa [#allocation7], 0
    // Predicated region
    $region2: #{vector_map_forward_padded.1} parent=1 // pred_check
      _
    $region3: #{vector_map_forward_padded.1} parent=1 // pred_check_branch
      %14 = sbr.rel (0) target = $region5
    $region4: #{vector_map_forward_padded.1} parent=1 // pred_region
      _
    $region5: #{vector_map_forward_padded.1} parent=1 // pred_fallthru
      _
    // Predicated region
    $region6: #{vector_map_forward_padded.1} parent=1 // pred_check
      _
    $region7: #{vector_map_forward_padded.1} parent=1 // pred_check_branch
      %16 = sbr.rel (0) target = $region9
    $region8: #{vector_map_forward_padded.1} parent=1 // pred_region
      %s18 = ssub.s32 2048, 2048
      %19 = vsyncadd [#allocation3], %s18
      %s20 = sshll.u32 [#allocation2], 4
      %s21 = int_to_ptr.vmem [resolvable:$true] %s20
      %26 = dma.hbm_to_vmem [thread:$0]  %s1, 2048, %s21, [#allocation3], 128, 128, 8
    $region9: #{vector_map_forward_padded.1} parent=1 // pred_fallthru
      _
    // Predicated region
    $region10: #{vector_map_forward_padded.1} parent=1 // pred_check
      _
    $region11: #{vector_map_forward_padded.1} parent=1 // pred_check_branch
      %28 = sbr.rel (0) target = $region13
    $region12: #{vector_map_forward_padded.1} parent=1 // pred_region
      _
    $region13: #{vector_map_forward_padded.1} parent=1 // pred_fallthru
      _
    // Predicated region
    $region14: #{vector_map_forward_padded.1} parent=1 // pred_check
      _
    $region15: #{vector_map_forward_padded.1} parent=1 // pred_check_branch
      %30 = sbr.rel (0) target = $region17
    $region16: #{vector_map_forward_padded.1} parent=1 // pred_region
      %31 = dma.done [#allocation3], 2048
    $region17: #{vector_map_forward_padded.1} parent=1 // pred_fallthru
      _
    %v32 = vld [vmem:[%s0] sm:$0xff]
    %v33 = vld [vmem:[#allocation2] sm:$0xff]
    %v34 = vld [vmem:[#allocation2 + $0x8] sm:$0xff]
    %v35 = vld [vmem:[#allocation2 + $0x10] sm:$0xff]
    %v36 = vld [vmem:[#allocation2 + $0x18] sm:$0xff]
    %v37 = vld [vmem:[#allocation2 + $0x20] sm:$0xff]
    %v38 = vld [vmem:[#allocation2 + $0x28] sm:$0xff]
    %v39 = vld [vmem:[#allocation2 + $0x30] sm:$0xff]
    %v40 = vld [vmem:[#allocation2 + $0x38] sm:$0xff]
    %v41 = vld [vmem:[#allocation2 + $0x40] sm:$0xff]
    %v42 = vld [vmem:[#allocation2 + $0x48] sm:$0xff]
    %v43 = vld [vmem:[#allocation2 + $0x50] sm:$0xff]
    %v44 = vld [vmem:[#allocation2 + $0x58] sm:$0xff]
    %v45 = vld [vmem:[#allocation2 + $0x60] sm:$0xff]
    %v46 = vld [vmem:[#allocation2 + $0x68] sm:$0xff]
    %v47 = vld [vmem:[#allocation2 + $0x70] sm:$0xff]
    %v48 = vld [vmem:[#allocation2 + $0x78] sm:$0xff]
    %v49 = vld [vmem:[%s2] sm:$0x1]
    %v51 = vlaneseq
    %v52 = vshrl.u32 %v51, 7
    %v53 = vsub.s32 0, %v52
    %v54 = vrot.slane %v49, %v53
    %56 = vmatprep.subr.mxu0 0.0
    %57 = vmatpush1.msra.mxu0 %v33
    %58 = vmatprep.subr.mxu0 0.0
    %59 = vmatpush1.msra.mxu0 %v34
    %60 = vmatprep.subr.mxu0 0.0
    %61 = vmatpush1.msra.mxu0 %v35
    %62 = vmatprep.subr.mxu0 0.0
    %63 = vmatpush1.msra.mxu0 %v36
    %64 = vmatprep.subr.mxu0 0.0
    %65 = vmatpush1.msra.mxu0 %v37
    %66 = vmatprep.subr.mxu0 0.0
    %67 = vmatpush1.msra.mxu0 %v38
    %68 = vmatprep.subr.mxu0 0.0
    %69 = vmatpush1.msra.mxu0 %v39
    %70 = vmatprep.subr.mxu0 0.0
    %71 = vmatpush1.msra.mxu0 %v40
    %72 = vmatprep.subr.mxu0 0.0
    %73 = vmatpush1.msra.mxu0 %v41
    %74 = vmatprep.subr.mxu0 0.0
    %75 = vmatpush1.msra.mxu0 %v42
    %76 = vmatprep.subr.mxu0 0.0
    %77 = vmatpush1.msra.mxu0 %v43
    %78 = vmatprep.subr.mxu0 0.0
    %79 = vmatpush1.msra.mxu0 %v44
    %80 = vmatprep.subr.mxu0 0.0
    %81 = vmatpush1.msra.mxu0 %v45
    %82 = vmatprep.subr.mxu0 0.0
    %83 = vmatpush1.msra.mxu0 %v46
    %84 = vmatprep.subr.mxu0 0.0
    %85 = vmatpush1.msra.mxu0 %v47
    %86 = vmatprep.subr.mxu0 0.0
    %87 = vmatpush1.msra.mxu0 %v48
    %88 = vmatprep.subr.mxu0 0.0
    %89 = vmatpush1.msra.mxu0 0.0
    %90 = vmatprep.subr.mxu0 0.0
    %91 = vmatpush1.msra.mxu0 0.0
    %92 = vmatprep.subr.mxu0 0.0
    %93 = vmatpush1.msra.mxu0 0.0
    %94 = vmatprep.subr.mxu0 0.0
    %95 = vmatpush1.msra.mxu0 0.0
    %96 = vmatprep.subr.mxu0 0.0
    %97 = vmatpush1.msra.mxu0 0.0
    %98 = vmatprep.subr.mxu0 0.0
    %99 = vmatpush1.msra.mxu0 0.0
    %100 = vmatprep.subr.mxu0 0.0
    %101 = vmatpush1.msra.mxu0 0.0
    %102 = vmatprep.subr.mxu0 0.0
    %103 = vmatpush1.msra.mxu0 0.0
    %104 = vmatprep.subr.mxu0 0.0
    %105 = vmatpush1.msra.mxu0 0.0
    %106 = vmatprep.subr.mxu0 0.0
    %107 = vmatpush1.msra.mxu0 0.0
    %108 = vmatprep.subr.mxu0 0.0
    %109 = vmatpush1.msra.mxu0 0.0
    %110 = vmatprep.subr.mxu0 0.0
    %111 = vmatpush1.msra.mxu0 0.0
    %112 = vmatprep.subr.mxu0 0.0
    %113 = vmatpush1.msra.mxu0 0.0
    %114 = vmatprep.subr.mxu0 0.0
    %115 = vmatpush1.msra.mxu0 0.0
    %116 = vmatprep.subr.mxu0 0.0
    %117 = vmatpush1.msra.mxu0 0.0
    %118 = vmatprep.subr.mxu0 0.0
    %119 = vmatpush1.msra.mxu0 0.0
    %120 = vmatprep.mubr.f32.mxu0 0.0
    %121 = vmatmul.mubr.f32.gmra.mrb[0].mxu0 %v32
    %v122 = vpop.f32.mrb[0].mxu0
    %v123 = vadd.f32 %v54, %v122
    %v124 = vpop.f32.mrb[0].mxu0
    %125 = vdwg.mxu0
    %126 = vst [vmem:[#allocation6] sm:$0xff] %v123
    %v127 = vmax.f32 %v123, 0.0
    %128 = vst [vmem:[#allocation5] sm:$0xff] %v127
    // Predicated region
    $region18: #{vector_map_forward_padded.1} parent=1 // pred_check
      _
    $region19: #{vector_map_forward_padded.1} parent=1 // pred_check_branch
      %130 = sbr.rel (0) target = $region21
    $region20: #{vector_map_forward_padded.1} parent=1 // pred_region
      %s132 = ssub.s32 128, 128
      %133 = vsyncadd [#allocation4], %s132
      %s135 = sshll.u32 [#allocation5], 4
      %s136 = int_to_ptr.vmem [resolvable:$true] %s135
      %138 = dma.vmem_to_hbm [thread:$0]  %s136, 128, %s3, [#allocation4]
    $region21: #{vector_map_forward_padded.1} parent=1 // pred_fallthru
      _
    // Predicated region
    $region22: #{vector_map_forward_padded.1} parent=1 // pred_check
      _
    $region23: #{vector_map_forward_padded.1} parent=1 // pred_check_branch
      %140 = sbr.rel (0) target = $region25
    $region24: #{vector_map_forward_padded.1} parent=1 // pred_region
      %s142 = ssub.s32 128, 128
      %143 = vsyncadd [#allocation7], %s142
      %s145 = sshll.u32 [#allocation6], 4
      %s146 = int_to_ptr.vmem [resolvable:$true] %s145
      %148 = dma.vmem_to_hbm [thread:$0]  %s146, 128, %s4, [#allocation7]
    $region25: #{vector_map_forward_padded.1} parent=1 // pred_fallthru
      _
    // Predicated region
    $region26: #{vector_map_forward_padded.1} parent=1 // pred_check
      _
    $region27: #{vector_map_forward_padded.1} parent=1 // pred_check_branch
      %150 = sbr.rel (0) target = $region29
    $region28: #{vector_map_forward_padded.1} parent=1 // pred_region
      %151 = dma.done [#allocation4], 128
    $region29: #{vector_map_forward_padded.1} parent=1 // pred_fallthru
      _
    // Predicated region
    $region30: #{vector_map_forward_padded.1} parent=1 // pred_check
      _
    $region31: #{vector_map_forward_padded.1} parent=1 // pred_check_branch
      %153 = sbr.rel (0) target = $region33
    $region32: #{vector_map_forward_padded.1} parent=1 // pred_region
      %154 = dma.done [#allocation7], 128
    $region33: #{vector_map_forward_padded.1} parent=1 // pred_fallthru
      _
    %155 = vsyncpa [#allocation3], 1
    %156 = vsyncpa [#allocation4], 1
    %157 = vsyncpa [#allocation7], 1

</llo_original>
